<compile_context>
chip_gen: v7x
topology: tpu7x:2x2x1
jax: 0.10.0
libtpu: 0.0.40
codegen_flags: <defaults>
</compile_context>

<pallas_src>
import functools
import math

import jax
import jax.numpy as jnp
from jax.experimental import pallas as pl
from jax.experimental.pallas import tpu as pltpu

_LOG_EPS = math.log(1e-8)  # log of the clamp floor used by the PyTorch module


def _round_up(x, m):
    return ((x + m - 1) // m) * m


# ----------------------------------------------------------------------------- kernels


def _nkd_target_kernel(logit_s_ref, logit_t_ref, target_ref, out_ref, *,
                       gamma, temp, batch, tile_b):
    """Partial SUM over this tile's rows of
       -t_tgt*log(clamp(s_tgt)) + gamma*temp^2 * (-sum_c norm_t*log(clamp(norm_s)))."""
    i = pl.program_id(0)
    inv_temp = 1.0 / temp

    s = logit_s_ref[...].astype(jnp.float32) * inv_temp
    t = logit_t_ref[...].astype(jnp.float32) * inv_temp

    # Student: shared shift/exp; softmax(s) never materialized — only the
    # per-row target prob (masked reduction of e_s) and log_softmax are needed.
    s_shift = s - jnp.max(s, axis=1, keepdims=True)
    e_s = jnp.exp(s_shift)
    sum_s = jnp.sum(e_s, axis=1, keepdims=True)                   # (TB, 1)
    log_p_s = s_shift - jnp.log(sum_s)                            # log_softmax(s)

    # Teacher: same trick; softmax(t) never materialized either.
    t_shift = t - jnp.max(t, axis=1, keepdims=True)
    e_t = jnp.exp(t_shift)
    sum_t = jnp.sum(e_t, axis=1, keepdims=True)                   # (TB, 1)

    tb, C = s.shape
    cls_ids = jax.lax.broadcasted_iota(jnp.int32, (tb, C), 1)
    is_target = cls_ids == target_ref[...]                        # (TB, C) bool

    # Per-row reciprocals multiplied in (no full-width divides).
    # approx=False kept on purpose: these only touch (TB,1) scalars so the cost
    # is negligible, and it keeps the strict 1e-4/1e-5 tolerance vs. reference.
    inv_sum_s = pl.reciprocal(sum_s, approx=False)
    inv_sum_t = pl.reciprocal(sum_t, approx=False)
    s_tgt = jnp.sum(jnp.where(is_target, e_s, 0.0), axis=1, keepdims=True) * inv_sum_s
    t_tgt = jnp.sum(jnp.where(is_target, e_t, 0.0), axis=1, keepdims=True) * inv_sum_t

    # softmax rows sum to 1  =>  non-target mass = 1 - target mass
    # (drops two full-width lane reductions and two (TB,C) multiplies).
    s_sum = jnp.maximum(1.0 - s_tgt, 1e-8)
    t_sum = jnp.maximum(1.0 - t_tgt, 1e-8)

    # log(clamp(norm_s,1e-8)) == max(log_p_s - log(s_sum), log 1e-8); the
    # non-target mask and the teacher weighting are fused into one (TB,C)
    # product, so no standalone p_s / p_t / t_non / log_norm_s buffers exist.
    contrib = jnp.where(is_target, 0.0,
                        e_t * jnp.maximum(log_p_s - jnp.log(s_sum), _LOG_EPS))
    # norm_t = e_t / (sum_t * t_sum) on non-target classes; per-row factor outside.
    row_non = -jnp.sum(contrib, axis=1, keepdims=True) \
        * (inv_sum_t * pl.reciprocal(t_sum, approx=False))        # (TB, 1)
    row_tgt = -t_tgt * jnp.log(jnp.maximum(s_tgt, 1e-8))          # (TB, 1)

    row_loss = row_tgt + (gamma * temp * temp) * row_non          # (TB, 1)

    # Ragged boundary tile: rows >= batch hold stale/undefined VMEM data; the
    # select (not a multiply) neutralizes them, including NaNs.
    row_ids = i * tile_b + jax.lax.broadcasted_iota(jnp.int32, (tb, 1), 0)
    row_loss = jnp.where(row_ids < batch, row_loss, 0.0)

    out_ref[...] = jnp.full(out_ref.shape, jnp.sum(row_loss), dtype=jnp.float32)


def _nkd_kldiv_kernel(logit_s_ref, logit_t_ref, out_ref, *, temp, batch, tile_b):
    """No-target branch: partial SUM of KL(softmax(t) || softmax(s)) rows.
       Wrapper divides by B and multiplies by temp^2 (batchmean semantics)."""
    i = pl.program_id(0)
    inv_temp = 1.0 / temp

    s = logit_s_ref[...].astype(jnp.float32) * inv_temp
    t = logit_t_ref[...].astype(jnp.float32) * inv_temp

    s_shift = s - jnp.max(s, axis=1, keepdims=True)
    log_p_s = s_shift - jnp.log(jnp.sum(jnp.exp(s_shift), axis=1, keepdims=True))

    t_shift = t - jnp.max(t, axis=1, keepdims=True)
    e_t = jnp.exp(t_shift)
    sum_t = jnp.sum(e_t, axis=1, keepdims=True)
    log_p_t = t_shift - jnp.log(sum_t)                            # log_softmax(t)

    # p_t*(log_p_t - log_p_s) with p_t never materialized: factor 1/sum_t out.
    row_kl = jnp.sum(e_t * (log_p_t - log_p_s), axis=1, keepdims=True) \
        * pl.reciprocal(sum_t, approx=False)                      # (TB, 1)

    tb = row_kl.shape[0]
    row_ids = i * tile_b + jax.lax.broadcasted_iota(jnp.int32, (tb, 1), 0)
    row_kl = jnp.where(row_ids < batch, row_kl, 0.0)

    out_ref[...] = jnp.full(out_ref.shape, jnp.sum(row_kl), dtype=jnp.float32)


# ----------------------------------------------------------------------------- wrapper


def _default_vmem_limit_bytes():
    """Generation-aware scoped-VMEM limit: ~3/4 of physical, capped at 100 MiB
    (=> ~48 MiB on v7x's 64 MiB, ~96 MiB on v5e/v6e's 128 MiB)."""
    try:
        cap = int(pltpu.get_tpu_info().vmem_capacity_bytes)
    except Exception:
        cap = 64 << 20  # conservative fallback valid on every generation
    return min((cap * 3) // 4, 100 << 20)


def _pick_tile_b(B, C, tile_b, vmem_limit_bytes, in_itemsize):
    """Largest tb (multiple of 8) whose live VMEM fits: 2 logit inputs x 2
    pipeline buffers in the *input* dtype + ~12 live f32 (tb,C) temporaries,
    kept within ~3/4 of the scoped limit (headroom for output/regalloc)."""
    per_row = 2 * 2 * C * in_itemsize + 12 * C * 4
    budget = (vmem_limit_bytes * 3) // 4
    max_tb = max(8, (budget // per_row) // 8 * 8)
    tb = min(_round_up(tile_b, 8), max_tb, _round_up(B, 8))
    return max(8, tb)


def nkd_loss(logit_s, logit_t, target=None, *, gamma=1.0, temp=1.0,
             tile_b=1024, vmem_limit_bytes=None):
    """Pallas NKD loss. logit_s, logit_t: (B, C) (f32 or bf16 — bf16 passes
    straight through and is upcast inside the kernel). target: optional (B,) int."""
    B, C = logit_s.shape
    if vmem_limit_bytes is None:
        vmem_limit_bytes = _default_vmem_limit_bytes()
    in_itemsize = jnp.dtype(logit_s.dtype).itemsize
    tb = _pick_tile_b(B, C, tile_b, vmem_limit_bytes, in_itemsize)

    # No wrapper-side jnp.pad (it would cost a full HBM copy of both logits):
    # the grid covers B with cdiv and the in-kernel row mask handles the ragged
    # boundary tile.
    num_tiles = pl.cdiv(B, tb)

    # With tiny tiles (huge C) a 2-deep pipeline no longer hides DMA issue
    # latency; go 3-deep on the two logit streams (headroom already reserved).
    if C >= 4096 and tb <= 32 and num_tiles > 2:
        logit_spec = pl.BlockSpec((tb, C), lambda i: (i, 0),
                                  pipeline_mode=pl.Buffered(3))
    else:
        logit_spec = pl.BlockSpec((tb, C), lambda i: (i, 0))

    out_shape = jax.ShapeDtypeStruct((num_tiles, 8, 128), jnp.float32)
    out_spec = pl.BlockSpec((1, 8, 128), lambda i: (i, 0, 0))
    params = pltpu.CompilerParams(
        dimension_semantics=("parallel",),     # per-tile partials are independent
        vmem_limit_bytes=int(vmem_limit_bytes),
    )

    if target is not None:
        # (TB,1) int32 VMEM block: the vectorized broadcast-compare needs a
        # vector operand, so SMEM scalar prefetch would be strictly worse here.
        target_col = target.astype(jnp.int32).reshape(B, 1)
        kernel = functools.partial(_nkd_target_kernel, gamma=float(gamma),
                                   temp=float(temp), batch=B, tile_b=tb)
        partials = pl.pallas_call(
            kernel,
            grid=(num_tiles,),
            out_shape=out_shape,
            in_specs=[logit_spec, logit_spec,
                      pl.BlockSpec((tb, 1), lambda i: (i, 0))],
            out_specs=out_spec,
            compiler_params=params,
        )(logit_s, logit_t, target_col)
        return jnp.sum(partials[:, 0, 0]) / B
    else:
        kernel = functools.partial(_nkd_kldiv_kernel, temp=float(temp),
                                   batch=B, tile_b=tb)
        partials = pl.pallas_call(
            kernel,
            grid=(num_tiles,),
            out_shape=out_shape,
            in_specs=[logit_spec, logit_spec],
            out_specs=out_spec,
            compiler_params=params,
        )(logit_s, logit_t)
        return jnp.sum(partials[:, 0, 0]) / B * (float(temp) ** 2)


# ----------------------------------------------------------------------------- reference


def _nkd_loss_ref(logit_s, logit_t, target=None, gamma=1.0, temp=1.0):
    """Pure-JAX reference mirroring the PyTorch module (for sanity check)."""
    s = jax.nn.softmax(logit_s / temp, axis=1)
    t = jax.nn.softmax(logit_t / temp, axis=1)
    if target is not None:
        mask = jax.nn.one_hot(target, logit_s.shape[1], dtype=s.dtype)
        s_tgt = jnp.sum(s * mask, axis=1)
        t_tgt = jnp.sum(t * mask, axis=1)
        s_non = s * (1 - mask)
        t_non = t * (1 - mask)
        s_sum = jnp.clip(jnp.sum(s_non, axis=1, keepdims=True), 1e-8)
        t_sum = jnp.clip(jnp.sum(t_non, axis=1, keepdims=True), 1e-8)
        norm_s = s_non / s_sum
        norm_t = t_non / t_sum
        tl = -jnp.mean(t_tgt * jnp.log(jnp.clip(s_tgt, 1e-8)))
        ntl = -jnp.mean(jnp.sum(norm_t * jnp.log(jnp.clip(norm_s, 1e-8)), axis=1))
        return tl + gamma * temp ** 2 * ntl
    else:
        log_p_s = jax.nn.log_softmax(logit_s / temp, axis=1)
        return jnp.sum(t * (jnp.log(t) - log_p_s)) / logit_s.shape[0] * temp ** 2


if __name__ == "__main__":
    gamma, temp = 1.0, 2.0

    def check(B, C, dtype, seed, rtol=1e-4, atol=1e-5):
        k1, k2, k3 = jax.random.split(jax.random.PRNGKey(seed), 3)
        ls = jax.random.normal(k1, (B, C), dtype=jnp.float32).astype(dtype)
        lt = jax.random.normal(k2, (B, C), dtype=jnp.float32).astype(dtype)
        tg = jax.random.randint(k3, (B,), 0, C, dtype=jnp.int32)
        ls_f, lt_f = ls.astype(jnp.float32), lt.astype(jnp.float32)

        loss = jax.block_until_ready(nkd_loss(ls, lt, tg, gamma=gamma, temp=temp))
        ref = _nkd_loss_ref(ls_f, lt_f, tg, gamma=gamma, temp=temp)
        assert jnp.allclose(loss, ref, rtol=rtol, atol=atol), (B, C, dtype, loss, ref)

        loss_kl = jax.block_until_ready(nkd_loss(ls, lt, None, gamma=gamma, temp=temp))
        ref_kl = _nkd_loss_ref(ls_f, lt_f, None, gamma=gamma, temp=temp)
        assert jnp.allclose(loss_kl, ref_kl, rtol=rtol, atol=atol), (B, C, dtype, loss_kl, ref_kl)

    # Case 1: small aligned shapes.
    check(8, 128, jnp.float32, seed=0)
    # Case 2: batch not a multiple of 8 — exercises the un-padded ragged
    # boundary tile + in-kernel row mask.
    check(13, 256, jnp.float32, seed=1)
    # Case 3: class count not a multiple of 128 (padded lanes masked by the
    # axis=1 reductions).
    check(12, 1000, jnp.float32, seed=2)
    # Case 4: bf16 logits passed straight through (kernel upcasts after load).
    check(16, 256, jnp.bfloat16, seed=3)

    print("KERNEL_OK")
</pallas_src>

<mosaic_0001>
module attributes {stable_mosaic.version = 11 : i64} {
  func.func @_nkd_target_kernel(%arg0: i32, %arg1: memref<8x128xf32, #tpu.memory_space<vmem>>, %arg2: memref<8x128xf32, #tpu.memory_space<vmem>>, %arg3: memref<8x1xi32, #tpu.memory_space<vmem>>, %arg4: memref<1x8x128xf32, #tpu.memory_space<vmem>>) attributes {dimension_semantics = [#tpu.dimension_semantics<parallel>], iteration_bounds = array<i64: 1>, scalar_prefetch = 0 : i64, scratch_operands = 0 : i64, tpu.core_type = #tpu.core_type<tc>, window_params = [{transform_indices = @transform_0, window_bounds = array<i64: 8, 128>}, {transform_indices = @transform_1, window_bounds = array<i64: 8, 128>}, {transform_indices = @transform_2, window_bounds = array<i64: 8, 1>}, {transform_indices = @transform_3, window_bounds = array<i64: 1, 8, 128>}]} {
    %c0 = arith.constant 0 : index
    %c0_0 = arith.constant 0 : index
    %0 = vector.load %arg1[%c0, %c0_0] : memref<8x128xf32, #tpu.memory_space<vmem>>, vector<8x128xf32>
    %cst = arith.constant 5.000000e-01 : f32
    %1 = vector.broadcast %cst : f32 to vector<8x128xf32>
    %2 = arith.mulf %0, %1 : vector<8x128xf32>
    %c0_1 = arith.constant 0 : index
    %c0_2 = arith.constant 0 : index
    %3 = vector.load %arg2[%c0_1, %c0_2] : memref<8x128xf32, #tpu.memory_space<vmem>>, vector<8x128xf32>
    %cst_3 = arith.constant 5.000000e-01 : f32
    %4 = vector.broadcast %cst_3 : f32 to vector<8x128xf32>
    %5 = arith.mulf %3, %4 : vector<8x128xf32>
    %cst_4 = arith.constant dense<0xFF800000> : vector<8xf32>
    %6 = vector.multi_reduction <maximumf>, %2, %cst_4 [1] : vector<8x128xf32> to vector<8xf32>
    %7 = vector.shape_cast %6 : vector<8xf32> to vector<8x1xf32>
    %8 = vector.broadcast %7 : vector<8x1xf32> to vector<8x128xf32>
    %9 = arith.subf %2, %8 : vector<8x128xf32>
    %10 = math.exp %9 : vector<8x128xf32>
    %cst_5 = arith.constant dense<0.000000e+00> : vector<8xf32>
    %11 = vector.multi_reduction <add>, %10, %cst_5 [1] : vector<8x128xf32> to vector<8xf32>
    %12 = vector.shape_cast %11 : vector<8xf32> to vector<8x1xf32>
    %13 = math.log %12 : vector<8x1xf32>
    %14 = vector.broadcast %13 : vector<8x1xf32> to vector<8x128xf32>
    %15 = arith.subf %9, %14 : vector<8x128xf32>
    %cst_6 = arith.constant dense<0xFF800000> : vector<8xf32>
    %16 = vector.multi_reduction <maximumf>, %5, %cst_6 [1] : vector<8x128xf32> to vector<8xf32>
    %17 = vector.shape_cast %16 : vector<8xf32> to vector<8x1xf32>
    %18 = vector.broadcast %17 : vector<8x1xf32> to vector<8x128xf32>
    %19 = arith.subf %5, %18 : vector<8x128xf32>
    %20 = math.exp %19 : vector<8x128xf32>
    %cst_7 = arith.constant dense<0.000000e+00> : vector<8xf32>
    %21 = vector.multi_reduction <add>, %20, %cst_7 [1] : vector<8x128xf32> to vector<8xf32>
    %22 = vector.shape_cast %21 : vector<8xf32> to vector<8x1xf32>
    %23 = tpu.iota {dimensions = array<i32: 1>} : vector<8x128xi32>
    %c0_8 = arith.constant 0 : index
    %c0_9 = arith.constant 0 : index
    %24 = vector.load %arg3[%c0_8, %c0_9] : memref<8x1xi32, #tpu.memory_space<vmem>>, vector<8x1xi32>
    %25 = vector.broadcast %24 : vector<8x1xi32> to vector<8x128xi32>
    %26 = arith.cmpi eq, %23, %25 : vector<8x128xi32>
    %27 = tpu.reciprocal %12 : vector<8x1xf32> -> vector<8x1xf32>
    %28 = tpu.reciprocal %22 : vector<8x1xf32> -> vector<8x1xf32>
    %cst_10 = arith.constant 0.000000e+00 : f32
    %29 = vector.broadcast %cst_10 : f32 to vector<8x128xf32>
    %30 = arith.select %26, %10, %29 : vector<8x128xi1>, vector<8x128xf32>
    %cst_11 = arith.constant dense<0.000000e+00> : vector<8xf32>
    %31 = vector.multi_reduction <add>, %30, %cst_11 [1] : vector<8x128xf32> to vector<8xf32>
    %32 = vector.shape_cast %31 : vector<8xf32> to vector<8x1xf32>
    %33 = arith.mulf %32, %27 : vector<8x1xf32>
    %cst_12 = arith.constant 0.000000e+00 : f32
    %34 = vector.broadcast %cst_12 : f32 to vector<8x128xf32>
    %35 = arith.select %26, %20, %34 : vector<8x128xi1>, vector<8x128xf32>
    %cst_13 = arith.constant dense<0.000000e+00> : vector<8xf32>
    %36 = vector.multi_reduction <add>, %35, %cst_13 [1] : vector<8x128xf32> to vector<8xf32>
    %37 = vector.shape_cast %36 : vector<8xf32> to vector<8x1xf32>
    %38 = arith.mulf %37, %28 : vector<8x1xf32>
    %cst_14 = arith.constant 1.000000e+00 : f32
    %39 = vector.broadcast %cst_14 : f32 to vector<8x1xf32>
    %40 = arith.subf %39, %33 : vector<8x1xf32>
    %cst_15 = arith.constant 9.99999993E-9 : f32
    %41 = vector.broadcast %cst_15 : f32 to vector<8x1xf32>
    %42 = arith.maximumf %40, %41 : vector<8x1xf32>
    %cst_16 = arith.constant 1.000000e+00 : f32
    %43 = vector.broadcast %cst_16 : f32 to vector<8x1xf32>
    %44 = arith.subf %43, %38 : vector<8x1xf32>
    %cst_17 = arith.constant 9.99999993E-9 : f32
    %45 = vector.broadcast %cst_17 : f32 to vector<8x1xf32>
    %46 = arith.maximumf %44, %45 : vector<8x1xf32>
    %47 = math.log %42 : vector<8x1xf32>
    %48 = vector.broadcast %47 : vector<8x1xf32> to vector<8x128xf32>
    %49 = arith.subf %15, %48 : vector<8x128xf32>
    %cst_18 = arith.constant -18.420681 : f32
    %50 = vector.broadcast %cst_18 : f32 to vector<8x128xf32>
    %51 = arith.maximumf %49, %50 : vector<8x128xf32>
    %52 = arith.mulf %20, %51 : vector<8x128xf32>
    %cst_19 = arith.constant 0.000000e+00 : f32
    %53 = vector.broadcast %cst_19 : f32 to vector<8x128xf32>
    %54 = arith.select %26, %53, %52 : vector<8x128xi1>, vector<8x128xf32>
    %cst_20 = arith.constant dense<0.000000e+00> : vector<8xf32>
    %55 = vector.multi_reduction <add>, %54, %cst_20 [1] : vector<8x128xf32> to vector<8xf32>
    %56 = vector.shape_cast %55 : vector<8xf32> to vector<8x1xf32>
    %cst_21 = arith.constant 0.000000e+00 : f32
    %57 = vector.broadcast %cst_21 : f32 to vector<8x1xf32>
    %58 = arith.subf %57, %56 : vector<8x1xf32>
    %59 = tpu.reciprocal %46 : vector<8x1xf32> -> vector<8x1xf32>
    %60 = arith.mulf %28, %59 : vector<8x1xf32>
    %61 = arith.mulf %58, %60 : vector<8x1xf32>
    %cst_22 = arith.constant 0.000000e+00 : f32
    %62 = vector.broadcast %cst_22 : f32 to vector<8x1xf32>
    %63 = arith.subf %62, %38 : vector<8x1xf32>
    %cst_23 = arith.constant 9.99999993E-9 : f32
    %64 = vector.broadcast %cst_23 : f32 to vector<8x1xf32>
    %65 = arith.maximumf %33, %64 : vector<8x1xf32>
    %66 = math.log %65 : vector<8x1xf32>
    %67 = arith.mulf %63, %66 : vector<8x1xf32>
    %cst_24 = arith.constant 4.000000e+00 : f32
    %68 = vector.broadcast %cst_24 : f32 to vector<8x1xf32>
    %69 = arith.mulf %68, %61 : vector<8x1xf32>
    %70 = arith.addf %67, %69 : vector<8x1xf32>
    %c8_i32 = arith.constant 8 : i32
    %71 = arith.muli %arg0, %c8_i32 : i32
    %72 = tpu.iota {dimensions = array<i32: 0>} : vector<8x1xi32>
    %73 = vector.broadcast %71 : i32 to vector<8x1xi32>
    %74 = arith.addi %73, %72 : vector<8x1xi32>
    %c8_i32_25 = arith.constant 8 : i32
    %75 = vector.broadcast %c8_i32_25 : i32 to vector<8x1xi32>
    %76 = arith.cmpi slt, %74, %75 : vector<8x1xi32>
    %cst_26 = arith.constant 0.000000e+00 : f32
    %77 = vector.broadcast %cst_26 : f32 to vector<8x1xf32>
    %78 = arith.select %76, %70, %77 : vector<8x1xi1>, vector<8x1xf32>
    %79 = vector.shape_cast %78 : vector<8x1xf32> to vector<1x8x1xf32>
    %cst_27 = arith.constant dense<0.000000e+00> : vector<1xf32>
    %80 = vector.multi_reduction <add>, %79, %cst_27 [1, 2] : vector<1x8x1xf32> to vector<1xf32>
    %81 = vector.shape_cast %80 : vector<1xf32> to vector<1x1x1xf32>
    %82 = vector.extract %81[0, 0, 0] : f32 from vector<1x1x1xf32>
    %83 = vector.broadcast %82 : f32 to vector<1x8x128xf32>
    %c0_28 = arith.constant 0 : index
    %c0_29 = arith.constant 0 : index
    %c0_30 = arith.constant 0 : index
    %84 = vector.load %arg4[%c0_28, %c0_29, %c0_30] : memref<1x8x128xf32, #tpu.memory_space<vmem>>, vector<1x8x128xf32>
    tpu.vector_store %arg4[%c0_28, %c0_29, %c0_30], %83 {strides = array<i32>} : memref<1x8x128xf32, #tpu.memory_space<vmem>>, vector<1x8x128xf32>,
    return
  }
  func.func @transform_0(%arg0: i32) -> (i32, i32) {
    %c0_i32 = arith.constant 0 : i32
    %c0_i32_0 = arith.constant 0 : i32
    return %arg0, %c0_i32 : i32, i32
  }
  func.func @transform_1(%arg0: i32) -> (i32, i32) {
    %c0_i32 = arith.constant 0 : i32
    %c0_i32_0 = arith.constant 0 : i32
    return %arg0, %c0_i32 : i32, i32
  }
  func.func @transform_2(%arg0: i32) -> (i32, i32) {
    %c0_i32 = arith.constant 0 : i32
    %c0_i32_0 = arith.constant 0 : i32
    return %arg0, %c0_i32 : i32, i32
  }
  func.func @transform_3(%arg0: i32) -> (i32, i32, i32) {
    %c0_i32 = arith.constant 0 : i32
    %c0_i32_0 = arith.constant 0 : i32
    %c0_i32_1 = arith.constant 0 : i32
    return %arg0, %c0_i32, %c0_i32_0 : i32, i32, i32
  }
}

</mosaic_0001>

<llo_original>
// kernel: tpu_custom_call.1
$region0: #{tpu_custom_call.1}
  #allocation0 [shape = 'u32[]', space=smem, size = 0x4, offset = 0x4, fixed_abs, tag = 'smem constant byte address 0x4 - core index']
  #allocation1 [shape = 'u32[144,128]{1,0:T(1,128)}', space=vmem, size = 0x12000, scoped, tag = 'internal scratch']
  %s0 = inlined_call_operand.vmem [shape: f32[8,128], index: 0, kind: input, shape index: {}]
  %s1 = inlined_call_operand.hbm [shape: f32[8,128], index: 1, kind: input, shape index: {}]
  %s2 = inlined_call_operand.vmem [shape: s32[8,1], index: 2, kind: input, shape index: {}]
  %s3 = inlined_call_operand.hbm [shape: f32[1,8,128], index: 3, kind: output, shape index: {}]
  %s4 = sld [smem:[#allocation0]]
  $region26: #{tpu_custom_call.1} parent=0
    _
  %s6 = ssub.s32 1, %s4
  %s7 = scalar_select 0, %s6, %s4
  $region1: #{tpu_custom_call.1} parent=0
    #allocation2 [shape = 'u8[4096]{0}', space=vmem, size = 0x1000, scoped, tag = 'input window, operand 1, single buffered']
    #allocation3 [shape = 's32[1]{0}', space=sflag, size = 0x4, scoped, tag = 'scoped memory for tpu_custom_call.1']
    #allocation4 [shape = 's32[1]{0}', space=sflag, size = 0x4, scoped, tag = 'scoped memory for tpu_custom_call.1']
    #allocation5 [shape = 'u8[4096]{0}', space=vmem, size = 0x1000, scoped, tag = 'output window, operand 0, single buffered']
    %8 = vsyncpa [#allocation3], 0
    %9 = vsyncpa [#allocation4], 0
    // Predicated region
    $region2: #{tpu_custom_call.1} parent=1 // pred_check
      _
    $region3: #{tpu_custom_call.1} parent=1 // pred_check_branch
      %11 = sbr.rel (0) target = $region5
    $region4: #{tpu_custom_call.1} parent=1 // pred_region
      _
    $region5: #{tpu_custom_call.1} parent=1 // pred_fallthru
      _
    // Predicated region
    $region6: #{tpu_custom_call.1} parent=1 // pred_check
      _
    $region7: #{tpu_custom_call.1} parent=1 // pred_check_branch
      %13 = sbr.rel (0) target = $region9
    $region8: #{tpu_custom_call.1} parent=1 // pred_region
      %s15 = ssub.s32 128, 128
      %16 = vsyncadd [#allocation3], %s15
      %s18 = sshll.u32 [#allocation2], 4
      %s19 = int_to_ptr.vmem [resolvable:$true] %s18
      %21 = dma.hbm_to_vmem [thread:$0]  %s1, 128, %s19, [#allocation3]
    $region9: #{tpu_custom_call.1} parent=1 // pred_fallthru
      _
    // Predicated region
    $region10: #{tpu_custom_call.1} parent=1 // pred_check
      _
    $region11: #{tpu_custom_call.1} parent=1 // pred_check_branch
      %23 = sbr.rel (0) target = $region13
    $region12: #{tpu_custom_call.1} parent=1 // pred_region
      _
    $region13: #{tpu_custom_call.1} parent=1 // pred_fallthru
      _
    // Predicated region
    $region14: #{tpu_custom_call.1} parent=1 // pred_check
      _
    $region15: #{tpu_custom_call.1} parent=1 // pred_check_branch
      %25 = sbr.rel (0) target = $region17
    $region16: #{tpu_custom_call.1} parent=1 // pred_region
      %26 = dma.done [#allocation3], 128
    $region17: #{tpu_custom_call.1} parent=1 // pred_fallthru
      _
    %v27 = vld [vmem:[%s0] sm:$0xff]
    %v28 = vmul.f32 %v27, 0.5
    %v29 = vld [vmem:[#allocation2] sm:$0xff]
    %v30 = vmul.f32 %v29, 0.5
    %31 = vmax.xlane.f32.xlu0 %v28
    %v32 = vpop.xlane.xlu0 %31
    %v33 = vsub.f32 %v28, %v32
    %v34 = vmul.f32 %v33, 1.442695
    %v35 = vpow.pop %v34
    %36 = vadd.xlane.f32.xlu0 %v35
    %v37 = vpop.xlane.xlu0 %36
    %v38 = vlog2.pop %v37
    %v39 = vmul.f32 %v38, 0.6931472
    %v40 = vsub.f32 %v33, %v39
    %41 = vmax.xlane.f32.xlu0 %v30
    %v42 = vpop.xlane.xlu0 %41
    %v43 = vsub.f32 %v30, %v42
    %v44 = vmul.f32 %v43, 1.442695
    %v45 = vpow.pop %v44
    %46 = vadd.xlane.f32.xlu0 %v45
    %v47 = vpop.xlane.xlu0 %46
    %v48 = vlaneseq
    %v49 = vand.u32 %v48, 127
    %v50 = vld [vmem:[%s2] sm:$0xff]
    %51 = vset.pattern.permute.xlu0 0
    %52 = vperm.xlu0 %51, %v50
    %v53 = vpop.permute.xlu0 %52
    %vm54 = vcmp.eq.s32.totalorder %v49, %v53
    %v55 = vrcp.pop %v37
    %v56 = vrcp.pop %v47
    %v57 = vsel %vm54, %v35, 0.0
    %58 = vadd.xlane.f32.xlu0 %v57
    %v59 = vpop.xlane.xlu0 %58
    %v60 = vmul.f32 %v59, %v55
    %v61 = vsel %vm54, %v45, 0.0
    %62 = vadd.xlane.f32.xlu0 %v61
    %v63 = vpop.xlane.xlu0 %62
    %v64 = vmul.f32 %v63, %v56
    %v65 = vsub.f32 1.0, %v60
    %v66 = vmax.f32 %v65, 1e-08
    %v67 = vsub.f32 1.0, %v64
    %v68 = vmax.f32 %v67, 1e-08
    %v69 = vlog2.pop %v66
    %v70 = vmul.f32 %v69, 0.6931472
    %v71 = vsub.f32 %v40, %v70
    %v72 = vmax.f32 %v71, -18.420681
    %v73 = vmul.f32 %v45, %v72
    %v74 = vsel %vm54, 0.0, %v73
    %75 = vadd.xlane.f32.xlu0 %v74
    %v76 = vpop.xlane.xlu0 %75
    %v77 = vsub.f32 0.0, %v76
    %v78 = vrcp.pop %v68
    %v79 = vmul.f32 %v56, %v78
    %v80 = vmul.f32 %v77, %v79
    %v81 = vsub.f32 0.0, %v64
    %v82 = vmax.f32 %v60, 1e-08
    %v83 = vlog2.pop %v82
    %v84 = vmul.f32 %v83, 0.6931472
    %v85 = vmul.f32 %v81, %v84
    %v86 = vmul.f32 %v80, 4.0
    %v87 = vadd.f32 %v85, %v86
    %s88 = smul.u32 0, 8
    %v89 = vlaneseq
    %v90 = vshrl.u32 %v89, 7
    %v91 = vstv %s88
    %v92 = vadd.s32 %v91, %v90
    %vm93 = vcmp.lt.s32.totalorder %v92, 8
    %v94 = vsel %vm93, %v87, 0.0
    %vm95 = vcmask 7168
    %v96 = vsel %vm95, %v94, 0.0
    %97 = vadd.xlane.f32.xlu0 %v96
    %v98 = vpop.xlane.xlu0 %97
    %v99 = vrot.slane %v98, 4
    %v100 = vadd.f32 %v98, %v99
    %v101 = vrot.slane %v100, 2
    %v102 = vadd.f32 %v100, %v101
    %v103 = vrot.slane %v102, 1
    %v104 = vadd.f32 %v102, %v103
    %s105 = vtos %v104
    %v106 = vstv %s105
    %107 = vst [vmem:[#allocation5] sm:$0xff] %v106
    // Predicated region
    $region18: #{tpu_custom_call.1} parent=1 // pred_check
      _
    $region19: #{tpu_custom_call.1} parent=1 // pred_check_branch
      %109 = sbr.rel (0) target = $region21
    $region20: #{tpu_custom_call.1} parent=1 // pred_region
      %s111 = ssub.s32 128, 128
      %112 = vsyncadd [#allocation4], %s111
      %s114 = sshll.u32 [#allocation5], 4
      %s115 = int_to_ptr.vmem [resolvable:$true] %s114
      %117 = dma.vmem_to_hbm [thread:$0]  %s115, 128, %s3, [#allocation4]
    $region21: #{tpu_custom_call.1} parent=1 // pred_fallthru
      _
    // Predicated region
    $region22: #{tpu_custom_call.1} parent=1 // pred_check
      _
    $region23: #{tpu_custom_call.1} parent=1 // pred_check_branch
      %119 = sbr.rel (0) target = $region25
    $region24: #{tpu_custom_call.1} parent=1 // pred_region
      %120 = dma.done [#allocation4], 128
    $region25: #{tpu_custom_call.1} parent=1 // pred_fallthru
      _
    %121 = vsyncpa [#allocation3], 1
    %122 = vsyncpa [#allocation4], 1

</llo_original>
